<compile_context>
chip_gen: v5e
topology: v5e:2x2
jax: 0.10.0
libtpu: 0.0.40
codegen_flags: <defaults>
</compile_context>

<pallas_src>
import functools

import jax
import jax.numpy as jnp
from jax import lax
from jax.experimental import pallas as pl
from jax.experimental.pallas import tpu as pltpu


# --------------------------------------------------------------------------- #
# helpers
# --------------------------------------------------------------------------- #

def _binarize(loc, *, training, out_dtype):
    # tanh/sign in f32 (v5e has no bf16 VPU/EUP path); cast on the way out.
    x = loc.astype(jnp.float32)
    w = jnp.tanh(x) if training else jnp.sign(x)   # sign(0) == 0, like torch.sign
    return w.astype(out_dtype)


def _round_up(x, m):
    return (x + m - 1) // m * m


def _pick_block(dim, unit, max_block):
    """Largest multiple of `unit` that divides `dim` and is <= max_block.
    Falls back to the full extent (always a legal BlockSpec minor dim)."""
    if dim % unit != 0:
        return dim
    max_block = max(unit, int(max_block))
    best = unit
    for b in range(unit, min(dim, max_block) + 1, unit):
        if dim % b == 0:
            best = b
    return best


def _vmem_budget():
    """Per-output-buffer block budget + scoped-VMEM limit, per TPU generation."""
    try:
        cap = int(pltpu.get_tpu_info().vmem_capacity_bytes)
    except Exception:
        cap = 64 << 20                                    # v7x-sized fallback
    block_budget = max(2 << 20, min(8 << 20, cap // 16))  # 4 MiB v7x, 8 MiB v5e/v6e
    vmem_limit = int(min(cap // 2, 64 << 20))             # 32 MiB v7x, 64 MiB v5e/v6e
    return block_budget, vmem_limit


# --------------------------------------------------------------------------- #
# fused path: write the permuted (K*dim_out, dim_in, K) output directly
# --------------------------------------------------------------------------- #

def _permuted_kernel(loc_t_ref, out_ref, *, training):
    """One (bo, bi, K) output block of the permuted weight.

    loc_t_ref : (bo, bi)    tile of loc_k^T   (rows: dim_out, cols: dim_in)
    out_ref   : (bo, bi, K) out[k*dim_out+o, i, j] = w_k[i, o] iff j == k else 0
    """
    k = pl.program_id(0)
    w_t = _binarize(loc_t_ref[...], training=training, out_dtype=out_ref.dtype)
    lane = lax.broadcasted_iota(jnp.int32, out_ref.shape, dimension=2)
    w_b = jnp.broadcast_to(w_t[:, :, None], out_ref.shape)
    out_ref[...] = jnp.where(lane == k, w_b, jnp.zeros_like(w_b))


def _permuted(locs, *, training, out_dtype):
    K, dim_in, dim_out = locs.shape
    out_isz = jnp.dtype(out_dtype).itemsize
    block_budget, vmem_limit = _vmem_budget()

    # bi tiles dim_in  (input lane axis: multiple of 128 or full;
    #                   output sublane axis: multiple of 8 or full).
    bi = _pick_block(dim_in, 128, 512)
    # bo tiles dim_out (input sublane axis: multiple of 8 or full).
    # The output block's trailing K axis is lane-padded to 128 in VMEM.
    max_bo = block_budget // max(1, _round_up(bi, 8) * 128 * out_isz)
    bo = _pick_block(dim_out, 8, max(8, max_bo))
    # TODO(synk): very large *unaligned* dim_in/dim_out fall back to full-extent
    # blocks and could exceed VMEM; pad upstream if such shapes ever appear.
    n_o, n_i = dim_out // bo, dim_in // bi
    grid = (K, n_o, n_i)

    # Only the small input gets a wrapper-side transpose (K*di*do elements);
    # the big permuted output is written directly by the kernel (single pass).
    locs_t = jnp.transpose(locs, (0, 2, 1))          # (K, dim_out, dim_in)

    kernel = functools.partial(_permuted_kernel, training=training)
    return pl.pallas_call(
        kernel,
        out_shape=jax.ShapeDtypeStruct((K * dim_out, dim_in, K), out_dtype),
        grid=grid,
        in_specs=[pl.BlockSpec((None, bo, bi), lambda k, io, ii: (k, io, ii))],
        out_specs=pl.BlockSpec((bo, bi, K),
                               lambda k, io, ii: (k * n_o + io, ii, 0)),
        compiler_params=pltpu.CompilerParams(
            dimension_semantics=("parallel",) * len(grid),
            vmem_limit_bytes=vmem_limit),
        cost_estimate=pl.CostEstimate(
            flops=3 * K * dim_in * dim_out,
            transcendentals=(K * dim_in * dim_out) if training else 0,
            bytes_accessed=int(locs.size) * locs.dtype.itemsize
            + K * dim_out * dim_in * K * out_isz),
    )(locs_t)


# --------------------------------------------------------------------------- #
# pre-permute path: lane-dense (K, dim_in, K*dim_out) for permute-folding users
# --------------------------------------------------------------------------- #

def _pre_permute_kernel(loc_ref, out_ref, *, training, kernel_size, dim_out):
    """One lane-dense (bm, K*dim_out) row slab of the pre-permute intermediate.

    loc_ref : (bm, dim_out)    row tile of block k's loc
    out_ref : (bm, K*dim_out)  inter[k, i, j*dim_out+o] = w_k[i, o] iff j == k
    """
    k = pl.program_id(0)
    w = _binarize(loc_ref[...], training=training, out_dtype=out_ref.dtype)
    zero = jnp.zeros_like(w)
    for j in range(kernel_size):          # static lane offsets: no dynamic stores
        out_ref[:, j * dim_out:(j + 1) * dim_out] = jnp.where(k == j, w, zero)


def _pre_permute(locs, *, training, out_dtype):
    K, dim_in, dim_out = locs.shape
    out_isz = jnp.dtype(out_dtype).itemsize
    block_budget, vmem_limit = _vmem_budget()

    max_bm = block_budget // max(1, _round_up(K * dim_out, 128) * out_isz)
    bm = _pick_block(dim_in, 8, max(8, max_bm))
    n_i = dim_in // bm
    grid = (K, n_i)

    kernel = functools.partial(_pre_permute_kernel, training=training,
                               kernel_size=K, dim_out=dim_out)
    return pl.pallas_call(
        kernel,
        out_shape=jax.ShapeDtypeStruct((K, dim_in, K * dim_out), out_dtype),
        grid=grid,
        in_specs=[pl.BlockSpec((None, bm, dim_out), lambda k, i: (k, i, 0))],
        out_specs=pl.BlockSpec((None, bm, K * dim_out), lambda k, i: (k, i, 0)),
        compiler_params=pltpu.CompilerParams(
            dimension_semantics=("parallel",) * len(grid),
            vmem_limit_bytes=vmem_limit),
        cost_estimate=pl.CostEstimate(
            flops=3 * K * dim_in * dim_out,
            transcendentals=(K * dim_in * dim_out) if training else 0,
            bytes_accessed=int(locs.size) * locs.dtype.itemsize
            + K * dim_in * K * dim_out * out_isz),
    )(locs)


# --------------------------------------------------------------------------- #
# public wrapper
# --------------------------------------------------------------------------- #

def stacked_binary_weight_3d(locs, *, training=False, out_dtype=None,
                             permute=True):
    """locs: (K, dim_in, dim_out) stacked per-block `loc` parameters.

    permute=True  -> (K*dim_out, dim_in, K): exactly the torch forward() output,
                     produced by a single fused kernel (no intermediate HBM pass).
    permute=False -> (K, dim_in, K*dim_out): pre-permute, lane-dense layout for
                     consumers that fold the permute into their dot/conv
                     dimension numbers (avoids a lane-padded last-dim-K tensor).
    """
    out_dtype = locs.dtype if out_dtype is None else jnp.dtype(out_dtype)
    if permute:
        return _permuted(locs, training=training, out_dtype=out_dtype)
    return _pre_permute(locs, training=training, out_dtype=out_dtype)


def _reference(locs, training):
    """Pure-JAX mirror of the PyTorch forward (block_diag -> reshape -> permute)."""
    K, di, do = locs.shape
    w = jnp.tanh(locs) if training else jnp.sign(locs)
    big = jnp.zeros((K * di, K * do), locs.dtype)
    for k in range(K):
        big = big.at[k * di:(k + 1) * di, k * do:(k + 1) * do].set(w[k])
    return jnp.transpose(big.reshape(K, di, K * do), (2, 1, 0))


if __name__ == "__main__":
    # Small, module-consistent shape: kernel_size=3, dim_in=4, dim_out=8.
    K, dim_in, dim_out = 3, 4, 8
    locs = jax.random.normal(jax.random.PRNGKey(0), (K, dim_in, dim_out),
                             dtype=jnp.float32)

    out_tr = jax.block_until_ready(stacked_binary_weight_3d(locs, training=True))
    out_ev = jax.block_until_ready(stacked_binary_weight_3d(locs, training=False))
    assert out_tr.shape == (K * dim_out, dim_in, K)
    assert jnp.allclose(out_tr, _reference(locs, training=True), atol=1e-5)
    assert jnp.allclose(out_ev, _reference(locs, training=False))

    # Aligned shape exercising the tiled grid on both paths.
    K2, di2, do2 = 3, 256, 128
    locs2 = jax.random.normal(jax.random.PRNGKey(0), (K2, di2, do2),
                              dtype=jnp.float32)
    out2 = jax.block_until_ready(stacked_binary_weight_3d(locs2, training=True))
    assert out2.shape == (K2 * do2, di2, K2)
    assert jnp.allclose(out2, _reference(locs2, training=True), atol=1e-5)

    pre2 = jax.block_until_ready(
        stacked_binary_weight_3d(locs2, training=False, permute=False))
    assert pre2.shape == (K2, di2, K2 * do2)
    assert jnp.allclose(jnp.transpose(pre2, (2, 1, 0)),
                        _reference(locs2, training=False))

    print("KERNEL_OK")
</pallas_src>

<mosaic_0001>
module attributes {stable_mosaic.version = 11 : i64} {
  func.func @_permuted_kernel(%arg0: i32, %arg1: i32, %arg2: i32, %arg3: memref<1x8x4xf32, #tpu.memory_space<vmem>>, %arg4: memref<8x4x3xf32, #tpu.memory_space<vmem>>) attributes {dimension_semantics = [#tpu.dimension_semantics<parallel>, #tpu.dimension_semantics<parallel>, #tpu.dimension_semantics<parallel>], iteration_bounds = array<i64: 3, 1, 1>, scalar_prefetch = 0 : i64, scratch_operands = 0 : i64, tpu.core_type = #tpu.core_type<tc>, window_params = [{transform_indices = @transform_0, window_bounds = array<i64: 1, 8, 4>}, {transform_indices = @transform_1, window_bounds = array<i64: 8, 4, 3>}]} {
    %c0 = arith.constant 0 : index
    %c0_0 = arith.constant 0 : index
    %c0_1 = arith.constant 0 : index
    %0 = vector.load %arg3[%c0, %c0_0, %c0_1] : memref<1x8x4xf32, #tpu.memory_space<vmem>>, vector<1x8x4xf32>
    %1 = vector.shape_cast %0 : vector<1x8x4xf32> to vector<8x4xf32>
    %2 = math.tanh %1 : vector<8x4xf32>
    %3 = tpu.iota {dimensions = array<i32: 2>} : vector<8x4x3xi32>
    %4 = vector.shape_cast %2 : vector<8x4xf32> to vector<8x4x1xf32>
    %5 = vector.shape_cast %4 : vector<8x4x1xf32> to vector<8x4x1xf32>
    %6 = vector.broadcast %5 : vector<8x4x1xf32> to vector<8x4x3xf32>
    %7 = vector.broadcast %arg0 : i32 to vector<8x4x3xi32>
    %8 = arith.cmpi eq, %3, %7 : vector<8x4x3xi32>
    %cst = arith.constant 0.000000e+00 : f32
    %9 = vector.broadcast %cst : f32 to vector<8x4x3xf32>
    %10 = arith.select %8, %6, %9 : vector<8x4x3xi1>, vector<8x4x3xf32>
    %c0_2 = arith.constant 0 : index
    %c0_3 = arith.constant 0 : index
    %c0_4 = arith.constant 0 : index
    %11 = vector.load %arg4[%c0_2, %c0_3, %c0_4] : memref<8x4x3xf32, #tpu.memory_space<vmem>>, vector<8x4x3xf32>
    tpu.vector_store %arg4[%c0_2, %c0_3, %c0_4], %10 {strides = array<i32>} : memref<8x4x3xf32, #tpu.memory_space<vmem>>, vector<8x4x3xf32>,
    return
  }
  func.func @transform_0(%arg0: i32, %arg1: i32, %arg2: i32) -> (i32, i32, i32) {
    %c0_i32 = arith.constant 0 : i32
    return %arg0, %arg1, %arg2 : i32, i32, i32
  }
  func.func @transform_1(%arg0: i32, %arg1: i32, %arg2: i32) -> (i32, i32, i32) {
    %c1_i32 = arith.constant 1 : i32
    %0 = arith.muli %arg0, %c1_i32 : i32
    %1 = arith.addi %0, %arg1 : i32
    %c0_i32 = arith.constant 0 : i32
    %c0_i32_0 = arith.constant 0 : i32
    return %1, %arg2, %c0_i32 : i32, i32, i32
  }
}

</mosaic_0001>

<llo_original>
// kernel: tpu_custom_call.1
$region0: #{tpu_custom_call.1}
  #allocation0 [shape = 'u32[]', space=smem, size = 0x4, offset = 0x4, fixed_abs, tag = 'smem constant byte address 0x4 - core index']
  #allocation1 [shape = 'u32[72,128]{1,0:T(1,128)}', space=vmem, size = 0x9000, scoped, tag = 'internal scratch']
  %s0 = inlined_call_operand.vmem [shape: f32[3,8,4], index: 0, kind: input, shape index: {}]
  %s1 = inlined_call_operand.vmem [shape: f32[24,4,3], index: 1, kind: output, shape index: {}]
  %s2 = sld [smem:[#allocation0]]
  $region37: #{tpu_custom_call.1} parent=0
    _
  %s4 = ssub.s32 1, %s2
  %s5 = scalar_select 0, %s4, %s2
  loop: start=0, step=1, limit=5
  $region2: #{tpu_custom_call.1} parent=0 // loop_pre_header
    _
  $region3: #{tpu_custom_call.1} parent=0 // loop_header
    %s7 = sphi 0, %s11
    %p8 = scmp.ge.s32.totalorder %s7, 5
    %s14 = sphi 0, %s33
    %s15 = sphi 0, %s29
    %s16 = sphi 0, %s25
    %s17 = sphi 0, %s14
    %s18 = sphi 0, %s15
    %s19 = sphi 0, %s16
    %s20 = sphi 0, %s17
    %s21 = sphi 0, %s18
    %s22 = sphi 0, %s19
    %s40 = sphi 0, %s42
    %s43 = sphi 0, %s40
    %s44 = sphi 0, %s43
    %s60 = sphi 0, %s44
    %s70 = sphi 0, %s72
    %s73 = sphi 0, %s70
    %s74 = sphi 0, %s73
    %s90 = sphi 0, %s74
  $region4: #{tpu_custom_call.1} parent=0 // loop_header_branch
    %10 = sbr.rel (%p8) target = $region8
  $region5: #{tpu_custom_call.1} parent=0 // loop_body
    %s12 = ssub.s32 %s7, 1
    %s13 = ssub.s32 %s7, 2
    %s23 = sadd.s32 1, %s16
    %p24 = scmp.ge.s32.totalorder %s23, 1
    %s25 = scalar_select %p24, 0, %s23
    %s26 = sadd.s32 1, %s15
    %s27 = scalar_select %p24, %s26, %s15
    %p28 = scmp.ge.s32.totalorder %s27, 1
    %s29 = scalar_select %p28, 0, %s27
    %s30 = sadd.s32 1, %s14
    %s31 = scalar_select %p28, %s30, %s14
    %p32 = scmp.ge.s32.totalorder %s31, 3
    %s33 = scalar_select %p32, 0, %s31
    %s34 = ssub.s32 %s14, %s33
    %s35 = ssub.s32 %s15, %s29
    %s36 = sor.u32 %s34, %s35
    %s37 = ssub.s32 %s16, %s25
    %s38 = sor.u32 %s36, %s37
    %p39 = scmp.eq.s32.totalorder %s38, 0
    %s41 = sadd.s32 %s40, 1
    %s42 = scalar_select %p39, %s40, %s41
    %p45 = pneg %p39
    %p46 = scmp.eq.s32.totalorder %s7, 2
    %p47 = por %p45, %p46
    %p48 = scmp.ne.s32.totalorder %s40, %s43
    %p49 = scmp.eq.s32.totalorder %s7, 0
    %p50 = por %p48, %p49
    %p51 = scmp.ne.s32.totalorder %s40, %s43
    %p52 = scmp.eq.s32.totalorder %s12, 2
    %p53 = por %p51, %p52
    %p54 = scmp.ne.s32.totalorder %s43, %s44
    %p55 = scmp.eq.s32.totalorder %s12, 0
    %p56 = por %p54, %p55
    %p57 = scmp.ne.s32.totalorder %s43, %s44
    %p58 = scmp.eq.s32.totalorder %s13, 2
    %p59 = por %p57, %p58
    %p61 = scmp.ne.s32.totalorder %s44, %s60
    %p62 = scmp.eq.s32.totalorder %s13, 0
    %p63 = por %p61, %p62
    %s64 = sadd.s32 %s14, %s15
    %s65 = sadd.s32 %s33, %s29
    %s66 = ssub.s32 %s64, %s65
    %s67 = ssub.s32 %s16, %s25
    %s68 = sor.u32 %s66, %s67
    %p69 = scmp.eq.s32.totalorder %s68, 0
    %s71 = sadd.s32 %s70, 1
    %s72 = scalar_select %p69, %s70, %s71
    %p75 = pneg %p69
    %p76 = scmp.eq.s32.totalorder %s7, 2
    %p77 = por %p75, %p76
    %p78 = scmp.ne.s32.totalorder %s70, %s73
    %p79 = scmp.eq.s32.totalorder %s7, 0
    %p80 = por %p78, %p79
    %p81 = scmp.ne.s32.totalorder %s70, %s73
    %p82 = scmp.eq.s32.totalorder %s12, 2
    %p83 = por %p81, %p82
    %p84 = scmp.ne.s32.totalorder %s73, %s74
    %p85 = scmp.eq.s32.totalorder %s12, 0
    %p86 = por %p84, %p85
    %p87 = scmp.ne.s32.totalorder %s73, %s74
    %p88 = scmp.eq.s32.totalorder %s13, 2
    %p89 = por %p87, %p88
    %p91 = scmp.ne.s32.totalorder %s74, %s90
    %p92 = scmp.eq.s32.totalorder %s13, 0
    %p93 = por %p91, %p92
    %p94 = scmp.le.s32.totalorder 1, %s7
    %p95 = scmp.lt.s32.totalorder %s7, 4
    %p96 = pnand %p94, %p95
    %p97 = pneg %p96
    // Predicated region
    $region9: #{tpu_custom_call.1} parent=5 // pred_check
      _
    $region10: #{tpu_custom_call.1} parent=5 // pred_check_branch
      %99 = sbr.rel (%p96) target = $region12
    $region11: #{tpu_custom_call.1} parent=5 // pred_region
      %s100 = ssub.s32 %s7, 1
    $region12: #{tpu_custom_call.1} parent=5 // pred_fallthru
      _
    %p101 = scmp.lt.s32.totalorder %s7, 3
    // Predicated region
    $region13: #{tpu_custom_call.1} parent=5 // pred_check
      %p102 = pneg %p101
    $region14: #{tpu_custom_call.1} parent=5 // pred_check_branch
      %104 = sbr.rel (%p102) target = $region16
    $region15: #{tpu_custom_call.1} parent=5 // pred_region
      // Predicated region
      $region17: #{tpu_custom_call.1} parent=15 // pred_check
        %p105 = pneg %p50
      $region18: #{tpu_custom_call.1} parent=15 // pred_check_branch
        %107 = sbr.rel (%p105) target = $region20
      $region19: #{tpu_custom_call.1} parent=15 // pred_region
        %p108 = scmp.lt.s32.totalorder %s14, 2
        %s109 = scalar_select %p108, %s14, 2
        %p110 = scmp.lt.s32.totalorder %s15, 0
        %s111 = scalar_select %p110, %s15, 0
        %p112 = scmp.lt.s32.totalorder %s16, 0
        %s113 = scalar_select %p112, %s16, 0
        %s114 = sadd.s32 %s113, %s111
        %s115 = sadd.s32 %s114, %s109
        %s116 = smul.addr %s115, 8
        %s117 = scalar_lea.vmem %s0, %s116
      $region20: #{tpu_custom_call.1} parent=15 // pred_fallthru
        _
    $region16: #{tpu_custom_call.1} parent=5 // pred_fallthru
      _
    %p118 = scmp.le.s32.totalorder 1, %s7
    %p119 = scmp.lt.s32.totalorder %s7, 4
    %p120 = pnand %p118, %p119
    %p121 = pneg %p120
    // Predicated region
    $region21: #{tpu_custom_call.1} parent=5 // pred_check
      _
    $region22: #{tpu_custom_call.1} parent=5 // pred_check_branch
      %123 = sbr.rel (%p120) target = $region24
    $region23: #{tpu_custom_call.1} parent=5 // pred_region
      %s124 = ssub.s32 %s7, 1
      %p125 = scmp.lt.s32.totalorder %s17, 2
      %s126 = scalar_select %p125, %s17, 2
      %p127 = scmp.lt.s32.totalorder %s18, 0
      %s128 = scalar_select %p127, %s18, 0
      %p129 = scmp.lt.s32.totalorder %s19, 0
      %s130 = scalar_select %p129, %s19, 0
      %s131 = sadd.s32 %s130, %s128
      %s132 = sadd.s32 %s131, %s126
      %s133 = smul.addr %s132, 8
      %s134 = scalar_lea.vmem %s0, %s133
      %p135 = pneg %p56
      %p136 = pneg %p53
      %p137 = pneg %p86
      %p138 = pneg %p83
      %s139 = sadd.s32 %s17, %s18
      %s140 = smul.u32 8, %s139
      %p141 = scmp.lt.s32.totalorder %s140, 23
      %s142 = scalar_select %p141, %s140, 23
      %p143 = scmp.lt.s32.totalorder %s19, 0
      %s144 = scalar_select %p143, %s19, 0
      %s145 = sadd.s32 %s144, %s142
      %s146 = smul.addr %s145, 4
      %s147 = scalar_lea.vmem %s1, %s146
      %p148 = scmp.lt.s32.totalorder %s17, 2
      %s149 = scalar_select %p148, %s17, 2
      %p150 = scmp.lt.s32.totalorder %s18, 0
      %s151 = scalar_select %p150, %s18, 0
      %p152 = scmp.lt.s32.totalorder %s19, 0
      %s153 = scalar_select %p152, %s19, 0
      %s154 = sadd.s32 %s153, %s151
      %s155 = sadd.s32 %s154, %s149
      %s156 = smul.addr %s155, 8
      %s157 = scalar_lea.vmem %s0, %s156
      %s158 = sadd.s32 %s17, %s18
      %s159 = smul.u32 8, %s158
      %p160 = scmp.lt.s32.totalorder %s159, 23
      %s161 = scalar_select %p160, %s159, 23
      %p162 = scmp.lt.s32.totalorder %s19, 0
      %s163 = scalar_select %p162, %s19, 0
      %s164 = sadd.s32 %s163, %s161
      %s165 = smul.addr %s164, 4
      %s166 = scalar_lea.vmem %s1, %s165
      %s167 = sadd.s32 %s17, %s18
      %s168 = smul.u32 8, %s167
      %v169 = vld [vmem:[%s157] sm:$0xff]
      %v170 = vtanh.pop %v169
      %v171 = vlaneseq
      %v172 = vand.u32 %v171, 127
      %v173 = vperm.slane %v170, 0
      %v174 = vlaneseq
      %v175 = vshrl.u32 %v174, 7
      %177 = vset.pattern.permute.xlu0 %v175
      %178 = vperm.xlu0 %177, %v173
      %v179 = vpop.permute.xlu0 %178
      %v180 = vperm.slane %v170, 1
      %v181 = vlaneseq
      %v182 = vshrl.u32 %v181, 7
      %184 = vset.pattern.permute.xlu0 %v182
      %185 = vperm.xlu0 %184, %v180
      %v186 = vpop.permute.xlu0 %185
      %v187 = vperm.slane %v170, 2
      %v188 = vlaneseq
      %v189 = vshrl.u32 %v188, 7
      %191 = vset.pattern.permute.xlu0 %v189
      %192 = vperm.xlu0 %191, %v187
      %v193 = vpop.permute.xlu0 %192
      %v194 = vperm.slane %v170, 3
      %v195 = vlaneseq
      %v196 = vshrl.u32 %v195, 7
      %198 = vset.pattern.permute.xlu0 %v196
      %199 = vperm.xlu0 %198, %v194
      %v200 = vpop.permute.xlu0 %199
      %v201 = vperm.slane %v170, 4
      %v202 = vlaneseq
      %v203 = vshrl.u32 %v202, 7
      %205 = vset.pattern.permute.xlu0 %v203
      %206 = vperm.xlu0 %205, %v201
      %v207 = vpop.permute.xlu0 %206
      %v208 = vperm.slane %v170, 5
      %v209 = vlaneseq
      %v210 = vshrl.u32 %v209, 7
      %212 = vset.pattern.permute.xlu0 %v210
      %213 = vperm.xlu0 %212, %v208
      %v214 = vpop.permute.xlu0 %213
      %v215 = vperm.slane %v170, 6
      %v216 = vlaneseq
      %v217 = vshrl.u32 %v216, 7
      %219 = vset.pattern.permute.xlu0 %v217
      %220 = vperm.xlu0 %219, %v215
      %v221 = vpop.permute.xlu0 %220
      %v222 = vperm.slane %v170, 7
      %v223 = vlaneseq
      %v224 = vshrl.u32 %v223, 7
      %226 = vset.pattern.permute.xlu0 %v224
      %227 = vperm.xlu0 %226, %v222
      %v228 = vpop.permute.xlu0 %227
      %v229 = vstv %s17
      %vm230 = vcmp.eq.s32.totalorder %v172, %v229
      %v231 = vsel %vm230, %v179, 0.0
      %v232 = vsel %vm230, %v186, 0.0
      %v233 = vsel %vm230, %v193, 0.0
      %v234 = vsel %vm230, %v200, 0.0
      %v235 = vsel %vm230, %v207, 0.0
      %v236 = vsel %vm230, %v214, 0.0
      %v237 = vsel %vm230, %v221, 0.0
      %v238 = vsel %vm230, %v228, 0.0
      %vm239 = vcmask 19456
      %240 = vst.msk [vmem:[%s166] sm:$0xf] %vm239, %v231
      %241 = vst.msk [vmem:[%s166 + $0x4] sm:$0xf] %vm239, %v232
      %242 = vst.msk [vmem:[%s166 + $0x8] sm:$0xf] %vm239, %v233
      %243 = vst.msk [vmem:[%s166 + $0xc] sm:$0xf] %vm239, %v234
      %244 = vst.msk [vmem:[%s166 + $0x10] sm:$0xf] %vm239, %v235
      %245 = vst.msk [vmem:[%s166 + $0x14] sm:$0xf] %vm239, %v236
      %246 = vst.msk [vmem:[%s166 + $0x18] sm:$0xf] %vm239, %v237
      %247 = vst.msk [vmem:[%s166 + $0x1c] sm:$0xf] %vm239, %v238
      %s248 = sadd.s32 %s17, %s18
      %s249 = smul.u32 8, %s248
      %p250 = scmp.lt.s32.totalorder %s249, 23
      %s251 = scalar_select %p250, %s249, 23
      %p252 = scmp.lt.s32.totalorder %s19, 0
      %s253 = scalar_select %p252, %s19, 0
      %s254 = sadd.s32 %s253, %s251
      %s255 = smul.addr %s254, 4
      %s256 = scalar_lea.vmem %s1, %s255
      // Predicated region
      $region25: #{tpu_custom_call.1} parent=23 // pred_check
        %p257 = pneg %p83
      $region26: #{tpu_custom_call.1} parent=23 // pred_check_branch
        %259 = sbr.rel (%p257) target = $region28
      $region27: #{tpu_custom_call.1} parent=23 // pred_region
        %s260 = sadd.s32 %s17, %s18
        %s261 = smul.u32 8, %s260
      $region28: #{tpu_custom_call.1} parent=23 // pred_fallthru
        _
    $region24: #{tpu_custom_call.1} parent=5 // pred_fallthru
      _
    %p262 = scmp.le.s32.totalorder 2, %s7
    // Predicated region
    $region29: #{tpu_custom_call.1} parent=5 // pred_check
      %p263 = pneg %p262
    $region30: #{tpu_custom_call.1} parent=5 // pred_check_branch
      %265 = sbr.rel (%p263) target = $region32
    $region31: #{tpu_custom_call.1} parent=5 // pred_region
      %s266 = ssub.s32 %s7, 2
      // Predicated region
      $region33: #{tpu_custom_call.1} parent=31 // pred_check
        %p267 = pneg %p89
      $region34: #{tpu_custom_call.1} parent=31 // pred_check_branch
        %269 = sbr.rel (%p267) target = $region36
      $region35: #{tpu_custom_call.1} parent=31 // pred_region
        %s270 = sadd.s32 %s20, %s21
        %s271 = smul.u32 8, %s270
        %p272 = scmp.lt.s32.totalorder %s271, 23
        %s273 = scalar_select %p272, %s271, 23
        %p274 = scmp.lt.s32.totalorder %s22, 0
        %s275 = scalar_select %p274, %s22, 0
        %s276 = sadd.s32 %s275, %s273
        %s277 = smul.addr %s276, 4
        %s278 = scalar_lea.vmem %s1, %s277
      $region36: #{tpu_custom_call.1} parent=31 // pred_fallthru
        _
    $region32: #{tpu_custom_call.1} parent=5 // pred_fallthru
      _
  $region6: #{tpu_custom_call.1} parent=0 // loop_footer
    %s11 = sadd.s32 1, %s7
  $region7: #{tpu_custom_call.1} parent=0 // loop_footer_branch
    %6 = sbr.rel target = $region3
  $region8: #{tpu_custom_call.1} parent=0 // loop_exit
    _

</llo_original>
